<compile_context>
chip_gen: v6e
topology: v6e:2x2x1
jax: 0.10.0
libtpu: 0.0.40
codegen_flags: <defaults>
</compile_context>

<pallas_src>
import functools

import jax
import jax.numpy as jnp
from jax.experimental import pallas as pl
from jax.experimental.pallas import tpu as pltpu

LANE = 128      # lane width (last dim of a vreg)
SUBLANE = 8     # f32 sublane count


def _round_up(n, m):
    return ((n + m - 1) // m) * m


# ----------------------------------------------------------------------------
# Fused MLP kernel: all matmuls back-to-back, activations stay in registers.
# refs = (x_ref, w0_ref, w_stack_ref, b_stack_ref, o_ref)
#   x_ref       : (batch_tile, Din)        f32   (true, unpadded feature dim)
#   w0_ref      : (Din, Dp)                weight_dtype
#   w_stack_ref : (n_layers-1, Dp, Dp)     weight_dtype   (hidden layers 1.. + output)
#   b_stack_ref : (n_layers, 1, Dp)        f32            (all biases)
#   o_ref       : (batch_tile, Dp)         f32
# ----------------------------------------------------------------------------
def _fused_mlp_kernel(x_ref, w0_ref, w_stack_ref, b_stack_ref, o_ref, *,
                      n_layers: int, compute_dtype):
    # Layer 0 (hidden): Linear + LeakyReLU(0.01); dropout = eval-mode identity.
    x = x_ref[...]
    y = jnp.dot(x.astype(compute_dtype), w0_ref[...],
                preferred_element_type=jnp.float32) + b_stack_ref[0]
    h = jnp.maximum(y, 0.01 * y)

    # Remaining hidden layers.
    for j in range(1, n_layers - 1):
        y = jnp.dot(h.astype(compute_dtype), w_stack_ref[j - 1],
                    preferred_element_type=jnp.float32) + b_stack_ref[j]
        h = jnp.maximum(y, 0.01 * y)

    # Output layer (no activation).
    y = jnp.dot(h.astype(compute_dtype), w_stack_ref[n_layers - 2],
                preferred_element_type=jnp.float32) + b_stack_ref[n_layers - 1]
    o_ref[...] = y.astype(o_ref.dtype)


# ----------------------------------------------------------------------------
# Deterministic parameter init mimicking the PyTorch module's __init__.
# ----------------------------------------------------------------------------
def _kaiming_uniform(key, fan_in, fan_out):
    # torch.nn.init.kaiming_uniform_ (a=0, fan_in mode): bound = sqrt(6 / fan_in)
    bound = jnp.sqrt(6.0 / fan_in)
    return jax.random.uniform(key, (fan_in, fan_out), jnp.float32, -bound, bound)


def _xavier_uniform(key, fan_in, fan_out):
    # torch.nn.init.xavier_uniform_: bound = sqrt(6 / (fan_in + fan_out))
    bound = jnp.sqrt(6.0 / (fan_in + fan_out))
    return jax.random.uniform(key, (fan_in, fan_out), jnp.float32, -bound, bound)


def _linear_bias(key, fan_in, fan_out):
    # nn.Linear default bias init: U(-1/sqrt(fan_in), 1/sqrt(fan_in))
    bound = 1.0 / jnp.sqrt(fan_in)
    return jax.random.uniform(key, (fan_out,), jnp.float32, -bound, bound)


def init_custom_qnetwork(key, rozmiar_wejscia, rozmiary_warstw, rozmiar_wyjscia):
    """Returns list of (W[in,out], b[out]) for all layers (hidden + output)."""
    sizes = [rozmiar_wejscia] + list(rozmiary_warstw)
    layers = []
    n_hidden = len(rozmiary_warstw)
    for i in range(n_hidden):
        key, kw, kb = jax.random.split(key, 3)
        fan_in, fan_out = sizes[i], sizes[i + 1]
        if i < n_hidden - 1:
            w = _kaiming_uniform(kw, fan_in, fan_out)
        else:
            w = _xavier_uniform(kw, fan_in, fan_out)
        b = _linear_bias(kb, fan_in, fan_out)
        layers.append((w, b))
    key, kw, kb = jax.random.split(key, 3)
    w_out = _xavier_uniform(kw, rozmiary_warstw[-1], rozmiar_wyjscia)
    b_out = _linear_bias(kb, rozmiary_warstw[-1], rozmiar_wyjscia)
    layers.append((w_out, b_out))
    return layers


def pad_and_stack_layers_for_tpu(layers, weight_dtype=jnp.float32):
    """Pack params into 3 arrays for the fused kernel.

    All feature dims other than the true input dim are zero-padded to a common
    lane-aligned width Dp.  Padded weight columns/rows and padded bias lanes
    are exactly zero, so padded activation lanes stay zero through LeakyReLU
    and the true Q-values can be sliced out of the last Dp-wide output.

    Returns (w0, w_stack, b_stack):
      w0      : (Din, Dp)               weight_dtype   (true, unpadded K)
      w_stack : (n_layers-1, Dp, Dp)    weight_dtype
      b_stack : (n_layers, 1, Dp)       float32
    """
    n_layers = len(layers)
    din0 = layers[0][0].shape[0]
    dp = _round_up(max(w.shape[1] for w, _ in layers), LANE)

    w0 = layers[0][0]
    w0_p = jnp.zeros((din0, dp), weight_dtype).at[:, :w0.shape[1]].set(
        w0.astype(weight_dtype))

    w_stack = jnp.zeros((n_layers - 1, dp, dp), weight_dtype)
    for j, (w, _) in enumerate(layers[1:]):
        w_stack = w_stack.at[j, :w.shape[0], :w.shape[1]].set(w.astype(weight_dtype))

    b_stack = jnp.zeros((n_layers, 1, dp), jnp.float32)
    for j, (_, b) in enumerate(layers):
        b_stack = b_stack.at[j, 0, :b.shape[0]].set(b)

    return w0_p, w_stack, b_stack


# ----------------------------------------------------------------------------
# Forward pass: single fused pallas_call, batch-tiled grid.
# ----------------------------------------------------------------------------
def custom_qnetwork_forward(params, x, *, rozmiar_wyjscia, batch_tile=None,
                            compute_dtype=jnp.float32):
    w0_p, w_stack, b_stack = params
    if x.ndim == 1:
        x = x[None, :]                       # x.unsqueeze(0)
    B, Din = x.shape
    assert Din == w0_p.shape[0]
    dp = w_stack.shape[-1]
    n_layers = int(b_stack.shape[0])

    # Batch tile: sublane-aligned, capped at 512 (big enough to amortise the
    # ~0.35us per-step overhead at training-size batches; B<=8 stays a single
    # tiny tile for latency-bound inference).
    if batch_tile is None:
        batch_tile = min(_round_up(B, SUBLANE), 512)
    B_p = _round_up(B, batch_tile)

    # Only batch-row padding (zero rows are discarded by the final slice).
    if B_p != B:
        x = jnp.zeros((B_p, Din), x.dtype).at[:B].set(x)

    kernel = functools.partial(_fused_mlp_kernel, n_layers=n_layers,
                               compute_dtype=compute_dtype)

    # Advisory cost estimate for the XLA scheduler.
    flops = int(2 * B_p * (Din * dp + (n_layers - 1) * dp * dp))
    bytes_accessed = int(
        x.size * x.dtype.itemsize
        + w0_p.size * w0_p.dtype.itemsize
        + w_stack.size * w_stack.dtype.itemsize
        + b_stack.size * 4
        + B_p * dp * 4
    )

    out_p = pl.pallas_call(
        kernel,
        out_shape=jax.ShapeDtypeStruct((B_p, dp), jnp.float32),
        grid=(B_p // batch_tile,),
        in_specs=[
            pl.BlockSpec((batch_tile, Din), lambda i: (i, 0)),     # x: batch-tiled
            pl.BlockSpec(w0_p.shape, lambda i: (0, 0)),            # constant per step
            pl.BlockSpec(w_stack.shape, lambda i: (0, 0, 0)),      # constant per step
            pl.BlockSpec(b_stack.shape, lambda i: (0, 0, 0)),      # constant per step
        ],
        # TODO(synk): for very large batches, benchmark a (B_p, rozmiar_wyjscia)
        # output (masked vst) against this lane-dense (B_p, Dp) output + slice.
        out_specs=pl.BlockSpec((batch_tile, dp), lambda i: (i, 0)),
        compiler_params=pltpu.CompilerParams(
            dimension_semantics=("parallel",),   # shards batch across TCs on v7x
        ),
        cost_estimate=pl.CostEstimate(
            flops=flops, transcendentals=0, bytes_accessed=bytes_accessed),
    )(x, w0_p, w_stack, b_stack)

    return out_p[:B, :rozmiar_wyjscia]


if __name__ == "__main__":
    # Small shapes consistent with the module: state dim 16, two hidden layers
    # of 32, 4 actions, batch of 2.
    rozmiar_wejscia = 16
    rozmiary_warstw = [32, 32]
    rozmiar_wyjscia = 4
    batch = 2

    key = jax.random.PRNGKey(0)
    key, k_params, k_x = jax.random.split(key, 3)

    layers = init_custom_qnetwork(
        k_params, rozmiar_wejscia, rozmiary_warstw, rozmiar_wyjscia
    )
    x = jax.random.normal(k_x, (batch, rozmiar_wejscia), dtype=jnp.float32)

    # Pure-JAX reference on the unpadded params (eval-mode forward).
    def ref_forward(layers, x):
        h = x
        for (w, b) in layers[:-1]:
            y = h @ w + b
            h = jnp.where(y > 0, y, 0.01 * y)
        w_out, b_out = layers[-1]
        return h @ w_out + b_out

    ref = ref_forward(layers, x)

    # ---- f32 path (matches PyTorch numerics) --------------------------------
    params_f32 = pad_and_stack_layers_for_tpu(layers, weight_dtype=jnp.float32)
    q_values = custom_qnetwork_forward(
        params_f32, x, rozmiar_wyjscia=rozmiar_wyjscia,
        compute_dtype=jnp.float32)
    jax.block_until_ready(q_values)
    assert q_values.shape == (batch, rozmiar_wyjscia)
    assert jnp.allclose(q_values, ref, atol=1e-5, rtol=1e-5)

    # ---- bf16 weights / MXU operands, f32 accumulation (v6e/v7x fast path) --
    params_bf16 = pad_and_stack_layers_for_tpu(layers, weight_dtype=jnp.bfloat16)
    q_values_bf16 = custom_qnetwork_forward(
        params_bf16, x, rozmiar_wyjscia=rozmiar_wyjscia,
        compute_dtype=jnp.bfloat16)
    jax.block_until_ready(q_values_bf16)
    assert q_values_bf16.shape == (batch, rozmiar_wyjscia)
    assert jnp.allclose(q_values_bf16, ref, atol=1e-1, rtol=5e-2)

    # 1-D input path (x.unsqueeze(0) behaviour).
    q_single = custom_qnetwork_forward(
        params_f32, x[0], rozmiar_wyjscia=rozmiar_wyjscia)
    jax.block_until_ready(q_single)
    assert q_single.shape == (1, rozmiar_wyjscia)
    assert jnp.allclose(q_single[0], ref[0], atol=1e-5, rtol=1e-5)

    print("KERNEL_OK")
</pallas_src>

<mosaic_0001>
module attributes {stable_mosaic.version = 11 : i64} {
  func.func @_fused_mlp_kernel(%arg0: i32, %arg1: memref<8x16xf32, #tpu.memory_space<vmem>>, %arg2: memref<16x128xf32, #tpu.memory_space<vmem>>, %arg3: memref<2x128x128xf32, #tpu.memory_space<vmem>>, %arg4: memref<3x1x128xf32, #tpu.memory_space<vmem>>, %arg5: memref<8x128xf32, #tpu.memory_space<vmem>>) attributes {dimension_semantics = [#tpu.dimension_semantics<parallel>], iteration_bounds = array<i64: 1>, scalar_prefetch = 0 : i64, scratch_operands = 0 : i64, tpu.core_type = #tpu.core_type<tc>, window_params = [{transform_indices = @transform_0, window_bounds = array<i64: 8, 16>}, {pipeline_mode = #tpu.pipeline_mode<synchronous>, transform_indices = @transform_1, window_bounds = array<i64: 16, 128>}, {pipeline_mode = #tpu.pipeline_mode<synchronous>, transform_indices = @transform_2, window_bounds = array<i64: 2, 128, 128>}, {pipeline_mode = #tpu.pipeline_mode<synchronous>, transform_indices = @transform_3, window_bounds = array<i64: 3, 1, 128>}, {transform_indices = @transform_4, window_bounds = array<i64: 8, 128>}]} {
    %c0 = arith.constant 0 : index
    %c0_0 = arith.constant 0 : index
    %0 = vector.load %arg1[%c0, %c0_0] : memref<8x16xf32, #tpu.memory_space<vmem>>, vector<8x16xf32>
    %c0_1 = arith.constant 0 : index
    %c0_2 = arith.constant 0 : index
    %1 = vector.load %arg2[%c0_1, %c0_2] : memref<16x128xf32, #tpu.memory_space<vmem>>, vector<16x128xf32>
    %cst = arith.constant dense<0.000000e+00> : vector<8x128xf32>
    %2 = tpu.matmul %0, %1, %cst {dimension_numbers = #tpu.dot_dimension_numbers<[1], [0], [0], [1], [0, 0, 1, 1], [], []>} : vector<8x16xf32>, vector<16x128xf32>, vector<8x128xf32> -> vector<8x128xf32>
    %c0_3 = arith.constant 0 : index
    %c0_4 = arith.constant 0 : index
    %c0_5 = arith.constant 0 : index
    %3 = vector.load %arg4[%c0_3, %c0_4, %c0_5] : memref<3x1x128xf32, #tpu.memory_space<vmem>>, vector<1x1x128xf32>
    %4 = vector.shape_cast %3 : vector<1x1x128xf32> to vector<1x128xf32>
    %5 = vector.broadcast %4 : vector<1x128xf32> to vector<8x128xf32>
    %6 = arith.addf %2, %5 : vector<8x128xf32>
    %cst_6 = arith.constant 0.00999999977 : f32
    %7 = vector.broadcast %cst_6 : f32 to vector<8x128xf32>
    %8 = arith.mulf %7, %6 : vector<8x128xf32>
    %9 = arith.maximumf %6, %8 : vector<8x128xf32>
    %c0_7 = arith.constant 0 : index
    %c0_8 = arith.constant 0 : index
    %c0_9 = arith.constant 0 : index
    %10 = vector.load %arg3[%c0_7, %c0_8, %c0_9] : memref<2x128x128xf32, #tpu.memory_space<vmem>>, vector<1x128x128xf32>
    %11 = vector.shape_cast %10 : vector<1x128x128xf32> to vector<128x128xf32>
    %cst_10 = arith.constant dense<0.000000e+00> : vector<8x128xf32>
    %12 = tpu.matmul %9, %11, %cst_10 {dimension_numbers = #tpu.dot_dimension_numbers<[1], [0], [0], [1], [0, 0, 1, 1], [], []>} : vector<8x128xf32>, vector<128x128xf32>, vector<8x128xf32> -> vector<8x128xf32>
    %c1 = arith.constant 1 : index
    %c0_11 = arith.constant 0 : index
    %c0_12 = arith.constant 0 : index
    %13 = vector.load %arg4[%c1, %c0_11, %c0_12] : memref<3x1x128xf32, #tpu.memory_space<vmem>>, vector<1x1x128xf32>
    %14 = vector.shape_cast %13 : vector<1x1x128xf32> to vector<1x128xf32>
    %15 = vector.broadcast %14 : vector<1x128xf32> to vector<8x128xf32>
    %16 = arith.addf %12, %15 : vector<8x128xf32>
    %cst_13 = arith.constant 0.00999999977 : f32
    %17 = vector.broadcast %cst_13 : f32 to vector<8x128xf32>
    %18 = arith.mulf %17, %16 : vector<8x128xf32>
    %19 = arith.maximumf %16, %18 : vector<8x128xf32>
    %c1_14 = arith.constant 1 : index
    %c0_15 = arith.constant 0 : index
    %c0_16 = arith.constant 0 : index
    %20 = vector.load %arg3[%c1_14, %c0_15, %c0_16] : memref<2x128x128xf32, #tpu.memory_space<vmem>>, vector<1x128x128xf32>
    %21 = vector.shape_cast %20 : vector<1x128x128xf32> to vector<128x128xf32>
    %cst_17 = arith.constant dense<0.000000e+00> : vector<8x128xf32>
    %22 = tpu.matmul %19, %21, %cst_17 {dimension_numbers = #tpu.dot_dimension_numbers<[1], [0], [0], [1], [0, 0, 1, 1], [], []>} : vector<8x128xf32>, vector<128x128xf32>, vector<8x128xf32> -> vector<8x128xf32>
    %c2 = arith.constant 2 : index
    %c0_18 = arith.constant 0 : index
    %c0_19 = arith.constant 0 : index
    %23 = vector.load %arg4[%c2, %c0_18, %c0_19] : memref<3x1x128xf32, #tpu.memory_space<vmem>>, vector<1x1x128xf32>
    %24 = vector.shape_cast %23 : vector<1x1x128xf32> to vector<1x128xf32>
    %25 = vector.broadcast %24 : vector<1x128xf32> to vector<8x128xf32>
    %26 = arith.addf %22, %25 : vector<8x128xf32>
    %c0_20 = arith.constant 0 : index
    %c0_21 = arith.constant 0 : index
    %27 = vector.load %arg5[%c0_20, %c0_21] : memref<8x128xf32, #tpu.memory_space<vmem>>, vector<8x128xf32>
    tpu.vector_store %arg5[%c0_20, %c0_21], %26 {strides = array<i32>} : memref<8x128xf32, #tpu.memory_space<vmem>>, vector<8x128xf32>,
    return
  }
  func.func @transform_0(%arg0: i32) -> (i32, i32) {
    %c0_i32 = arith.constant 0 : i32
    %c0_i32_0 = arith.constant 0 : i32
    return %arg0, %c0_i32 : i32, i32
  }
  func.func @transform_1(%arg0: i32) -> (i32, i32) {
    %c0_i32 = arith.constant 0 : i32
    %c0_i32_0 = arith.constant 0 : i32
    %c0_i32_1 = arith.constant 0 : i32
    return %c0_i32, %c0_i32_0 : i32, i32
  }
  func.func @transform_2(%arg0: i32) -> (i32, i32, i32) {
    %c0_i32 = arith.constant 0 : i32
    %c0_i32_0 = arith.constant 0 : i32
    %c0_i32_1 = arith.constant 0 : i32
    %c0_i32_2 = arith.constant 0 : i32
    return %c0_i32, %c0_i32_0, %c0_i32_1 : i32, i32, i32
  }
  func.func @transform_3(%arg0: i32) -> (i32, i32, i32) {
    %c0_i32 = arith.constant 0 : i32
    %c0_i32_0 = arith.constant 0 : i32
    %c0_i32_1 = arith.constant 0 : i32
    %c0_i32_2 = arith.constant 0 : i32
    return %c0_i32, %c0_i32_0, %c0_i32_1 : i32, i32, i32
  }
  func.func @transform_4(%arg0: i32) -> (i32, i32) {
    %c0_i32 = arith.constant 0 : i32
    %c0_i32_0 = arith.constant 0 : i32
    return %arg0, %c0_i32 : i32, i32
  }
}

</mosaic_0001>

<llo_original>
// kernel: tpu_custom_call.1
$region0: #{tpu_custom_call.1}
  #allocation0 [shape = 'u32[]', space=smem, size = 0x4, offset = 0x4, fixed_abs, tag = 'smem constant byte address 0x4 - core index']
  #allocation1 [shape = 'u32[144,128]{1,0:T(1,128)}', space=vmem, size = 0x12000, scoped, tag = 'internal scratch']
  %s0 = inlined_call_operand.hbm [shape: f32[8,16], index: 0, kind: input, shape index: {}]
  %s1 = inlined_call_operand.hbm [shape: f32[16,128], index: 1, kind: input, shape index: {}]
  %s2 = inlined_call_operand.hbm [shape: f32[2,128,128], index: 2, kind: input, shape index: {}]
  %s3 = inlined_call_operand.vmem [shape: f32[3,1,128], index: 3, kind: input, shape index: {}]
  %s4 = inlined_call_operand.hbm [shape: f32[8,128], index: 4, kind: output, shape index: {}]
  %s5 = sld [smem:[#allocation0]]
  $region38: #{tpu_custom_call.1} parent=0
    _
  %s7 = ssub.s32 1, %s5
  %s8 = scalar_select 0, %s7, %s5
  $region1: #{tpu_custom_call.1} parent=0
    #allocation2 [shape = 'u8[4096]{0}', space=vmem, size = 0x1000, scoped, tag = 'input window, operand 0, single buffered']
    #allocation3 [shape = 's32[1]{0}', space=sflag, size = 0x4, scoped, tag = 'scoped memory for tpu_custom_call.1']
    #allocation4 [shape = 's32[1]{0}', space=sflag, size = 0x4, scoped, tag = 'scoped memory for tpu_custom_call.1']
    #allocation5 [shape = 'u8[8192]{0}', space=vmem, size = 0x2000, scoped, tag = 'input window, operand 1, single buffered']
    #allocation6 [shape = 's32[1]{0}', space=sflag, size = 0x4, scoped, tag = 'scoped memory for tpu_custom_call.1']
    #allocation7 [shape = 'u8[131072]{0}', space=vmem, size = 0x20000, scoped, tag = 'input window, operand 2, single buffered']
    #allocation8 [shape = 'u8[4096]{0}', space=vmem, size = 0x1000, scoped, tag = 'output window, operand 0, single buffered']
    %9 = vsyncpa [#allocation3], 0
    %10 = vsyncpa [#allocation6], 0
    %11 = vsyncpa [#allocation4], 0
    // Predicated region
    $region2: #{tpu_custom_call.1} parent=1 // pred_check
      _
    $region3: #{tpu_custom_call.1} parent=1 // pred_check_branch
      %13 = sbr.rel (0) target = $region5
    $region4: #{tpu_custom_call.1} parent=1 // pred_region
      %s15 = ssub.s32 128, 128
      %16 = vsyncadd [#allocation3], %s15
      %s18 = sshll.u32 [#allocation2], 4
      %s19 = int_to_ptr.vmem [resolvable:$true] %s18
      %21 = dma.hbm_to_vmem [thread:$0]  %s0, 128, %s19, [#allocation3]
    $region5: #{tpu_custom_call.1} parent=1 // pred_fallthru
      _
    // Predicated region
    $region6: #{tpu_custom_call.1} parent=1 // pred_check
      _
    $region7: #{tpu_custom_call.1} parent=1 // pred_check_branch
      %23 = sbr.rel (0) target = $region9
    $region8: #{tpu_custom_call.1} parent=1 // pred_region
      %s25 = ssub.s32 256, 256
      %26 = vsyncadd [#allocation6], %s25
      %s27 = sshll.u32 [#allocation5], 4
      %s28 = int_to_ptr.vmem [resolvable:$true] %s27
      %33 = dma.hbm_to_vmem [thread:$0]  %s1, 256, %s28, [#allocation6], 128, 128, 8
    $region9: #{tpu_custom_call.1} parent=1 // pred_fallthru
      _
    // Predicated region
    $region10: #{tpu_custom_call.1} parent=1 // pred_check
      _
    $region11: #{tpu_custom_call.1} parent=1 // pred_check_branch
      %35 = sbr.rel (0) target = $region13
    $region12: #{tpu_custom_call.1} parent=1 // pred_region
      %s37 = ssub.s32 4096, 4096
      %38 = vsyncadd [#allocation6], %s37
      %s39 = sshll.u32 [#allocation7], 4
      %s40 = int_to_ptr.vmem [resolvable:$true] %s39
      %45 = dma.hbm_to_vmem [thread:$0]  %s2, 4096, %s40, [#allocation6], 128, 128, 8
    $region13: #{tpu_custom_call.1} parent=1 // pred_fallthru
      _
    // Predicated region
    $region14: #{tpu_custom_call.1} parent=1 // pred_check
      _
    $region15: #{tpu_custom_call.1} parent=1 // pred_check_branch
      %47 = sbr.rel (0) target = $region17
    $region16: #{tpu_custom_call.1} parent=1 // pred_region
      _
    $region17: #{tpu_custom_call.1} parent=1 // pred_fallthru
      _
    // Predicated region
    $region18: #{tpu_custom_call.1} parent=1 // pred_check
      _
    $region19: #{tpu_custom_call.1} parent=1 // pred_check_branch
      %49 = sbr.rel (0) target = $region21
    $region20: #{tpu_custom_call.1} parent=1 // pred_region
      %50 = dma.done [#allocation3], 128
    $region21: #{tpu_custom_call.1} parent=1 // pred_fallthru
      _
    // Predicated region
    $region22: #{tpu_custom_call.1} parent=1 // pred_check
      _
    $region23: #{tpu_custom_call.1} parent=1 // pred_check_branch
      %52 = sbr.rel (0) target = $region25
    $region24: #{tpu_custom_call.1} parent=1 // pred_region
      %53 = dma.done [#allocation6], 256
    $region25: #{tpu_custom_call.1} parent=1 // pred_fallthru
      _
    // Predicated region
    $region26: #{tpu_custom_call.1} parent=1 // pred_check
      _
    $region27: #{tpu_custom_call.1} parent=1 // pred_check_branch
      %55 = sbr.rel (0) target = $region29
    $region28: #{tpu_custom_call.1} parent=1 // pred_region
      %56 = dma.done [#allocation6], 4096
    $region29: #{tpu_custom_call.1} parent=1 // pred_fallthru
      _
    %v57 = vld [vmem:[#allocation2] sm:$0xff]
    %v58 = vld [vmem:[#allocation5] sm:$0xff]
    %v59 = vld [vmem:[#allocation5 + $0x8] sm:$0xff]
    %v60 = vld [vmem:[%s3] sm:$0x1]
    %v62 = vlaneseq
    %v63 = vshrl.u32 %v62, 7
    %v64 = vsub.s32 0, %v63
    %v65 = vrot.slane %v60, %v64
    %vm67 = vcmask 130048
    %v69 = vsel %vm67, %v57, 0
    %71 = vmatprep.subr.mxu0 0.0
    %72 = vmatpush1.msra.mxu0 0.0
    %73 = vmatprep.subr.mxu0 0.0
    %74 = vmatpush1.msra.mxu0 0.0
    %75 = vmatprep.subr.mxu0 0.0
    %76 = vmatpush1.msra.mxu0 0.0
    %77 = vmatprep.subr.mxu0 0.0
    %78 = vmatpush1.msra.mxu0 0.0
    %79 = vmatprep.subr.mxu0 0.0
    %80 = vmatpush1.msra.mxu0 0.0
    %81 = vmatprep.subr.mxu0 0.0
    %82 = vmatpush1.msra.mxu0 0.0
    %83 = vmatprep.subr.mxu0 0.0
    %84 = vmatpush1.msra.mxu0 0.0
    %85 = vmatprep.subr.mxu0 0.0
    %86 = vmatpush1.msra.mxu0 0.0
    %87 = vmatprep.subr.mxu0 0.0
    %88 = vmatpush1.msra.mxu0 0.0
    %89 = vmatprep.subr.mxu0 0.0
    %90 = vmatpush1.msra.mxu0 0.0
    %91 = vmatprep.subr.mxu0 0.0
    %92 = vmatpush1.msra.mxu0 0.0
    %93 = vmatprep.subr.mxu0 0.0
    %94 = vmatpush1.msra.mxu0 0.0
    %95 = vmatprep.subr.mxu0 0.0
    %96 = vmatpush1.msra.mxu0 0.0
    %97 = vmatprep.subr.mxu0 0.0
    %98 = vmatpush1.msra.mxu0 0.0
    %99 = vmatprep.subr.mxu0 0.0
    %100 = vmatpush1.msra.mxu0 %v59
    %101 = vmatprep.subr.mxu0 0.0
    %102 = vmatpush1.msra.mxu0 %v58
    %103 = vmatprep.subr.mxu0 0.0
    %104 = vmatpush2.msra.mxu0 0.0
    %105 = vmatprep.subr.mxu0 0.0
    %106 = vmatpush2.msra.mxu0 0.0
    %107 = vmatprep.subr.mxu0 0.0
    %108 = vmatpush2.msra.mxu0 0.0
    %109 = vmatprep.subr.mxu0 0.0
    %110 = vmatpush2.msra.mxu0 0.0
    %111 = vmatprep.subr.mxu0 0.0
    %112 = vmatpush2.msra.mxu0 0.0
    %113 = vmatprep.subr.mxu0 0.0
    %114 = vmatpush2.msra.mxu0 0.0
    %115 = vmatprep.subr.mxu0 0.0
    %116 = vmatpush2.msra.mxu0 0.0
    %117 = vmatprep.subr.mxu0 0.0
    %118 = vmatpush2.msra.mxu0 0.0
    %119 = vmatprep.subr.mxu0 0.0
    %120 = vmatpush2.msra.mxu0 0.0
    %121 = vmatprep.subr.mxu0 0.0
    %122 = vmatpush2.msra.mxu0 0.0
    %123 = vmatprep.subr.mxu0 0.0
    %124 = vmatpush2.msra.mxu0 0.0
    %125 = vmatprep.subr.mxu0 0.0
    %126 = vmatpush2.msra.mxu0 0.0
    %127 = vmatprep.subr.mxu0 0.0
    %128 = vmatpush2.msra.mxu0 0.0
    %129 = vmatprep.subr.mxu0 0.0
    %130 = vmatpush2.msra.mxu0 0.0
    %131 = vmatprep.subr.mxu0 0.0
    %132 = vmatpush2.msra.mxu0 0.0
    %133 = vmatprep.subr.mxu0 0.0
    %134 = vmatpush2.msra.mxu0 0.0
    %135 = vmatprep.mubr.f32.mxu0 0.0
    %136 = vmatmul.mubr.f32.gmra.mxu0 %v69
    %v137 = vpop.f32.mrf.mxu0
    %v138 = vadd.f32 %v65, %v137
    %v139 = vpop.f32.mrf.mxu0
    %140 = vdwg.mxu0
    %v141 = vmul.f32 %v138, 0.01
    %v142 = vmax.f32 %v138, %v141
    %v143 = vld [vmem:[#allocation7] sm:$0xff]
    %v144 = vld [vmem:[#allocation7 + $0x8] sm:$0xff]
    %v145 = vld [vmem:[#allocation7 + $0x10] sm:$0xff]
    %v146 = vld [vmem:[#allocation7 + $0x18] sm:$0xff]
    %v147 = vld [vmem:[#allocation7 + $0x20] sm:$0xff]
    %v148 = vld [vmem:[#allocation7 + $0x28] sm:$0xff]
    %v149 = vld [vmem:[#allocation7 + $0x30] sm:$0xff]
    %v150 = vld [vmem:[#allocation7 + $0x38] sm:$0xff]
    %v151 = vld [vmem:[#allocation7 + $0x40] sm:$0xff]
    %v152 = vld [vmem:[#allocation7 + $0x48] sm:$0xff]
    %v153 = vld [vmem:[#allocation7 + $0x50] sm:$0xff]
    %v154 = vld [vmem:[#allocation7 + $0x58] sm:$0xff]
    %v155 = vld [vmem:[#allocation7 + $0x60] sm:$0xff]
    %v156 = vld [vmem:[#allocation7 + $0x68] sm:$0xff]
    %v157 = vld [vmem:[#allocation7 + $0x70] sm:$0xff]
    %v158 = vld [vmem:[#allocation7 + $0x78] sm:$0xff]
    %s159 = scalar_lea.vmem %s3, 1
    %v160 = vld [vmem:[%s159] sm:$0x1]
    %v162 = vlaneseq
    %v163 = vshrl.u32 %v162, 7
    %v164 = vsub.s32 0, %v163
    %v165 = vrot.slane %v160, %v164
    %167 = vmatprep.subr.mxu0 0.0
    %168 = vmatpush1.msra.mxu0 %v158
    %169 = vmatprep.subr.mxu0 0.0
    %170 = vmatpush1.msra.mxu0 %v157
    %171 = vmatprep.subr.mxu0 0.0
    %172 = vmatpush1.msra.mxu0 %v156
    %173 = vmatprep.subr.mxu0 0.0
    %174 = vmatpush1.msra.mxu0 %v155
    %175 = vmatprep.subr.mxu0 0.0
    %176 = vmatpush1.msra.mxu0 %v154
    %177 = vmatprep.subr.mxu0 0.0
    %178 = vmatpush1.msra.mxu0 %v153
    %179 = vmatprep.subr.mxu0 0.0
    %180 = vmatpush1.msra.mxu0 %v152
    %181 = vmatprep.subr.mxu0 0.0
    %182 = vmatpush1.msra.mxu0 %v151
    %183 = vmatprep.subr.mxu0 0.0
    %184 = vmatpush1.msra.mxu0 %v150
    %185 = vmatprep.subr.mxu0 0.0
    %186 = vmatpush1.msra.mxu0 %v149
    %187 = vmatprep.subr.mxu0 0.0
    %188 = vmatpush1.msra.mxu0 %v148
    %189 = vmatprep.subr.mxu0 0.0
    %190 = vmatpush1.msra.mxu0 %v147
    %191 = vmatprep.subr.mxu0 0.0
    %192 = vmatpush1.msra.mxu0 %v146
    %193 = vmatprep.subr.mxu0 0.0
    %194 = vmatpush1.msra.mxu0 %v145
    %195 = vmatprep.subr.mxu0 0.0
    %196 = vmatpush1.msra.mxu0 %v144
    %197 = vmatprep.subr.mxu0 0.0
    %198 = vmatpush1.msra.mxu0 %v143
    %199 = vmatprep.subr.mxu0 0.0
    %200 = vmatpush2.msra.mxu0 0.0
    %201 = vmatprep.subr.mxu0 0.0
    %202 = vmatpush2.msra.mxu0 0.0
    %203 = vmatprep.subr.mxu0 0.0
    %204 = vmatpush2.msra.mxu0 0.0
    %205 = vmatprep.subr.mxu0 0.0
    %206 = vmatpush2.msra.mxu0 0.0
    %207 = vmatprep.subr.mxu0 0.0
    %208 = vmatpush2.msra.mxu0 0.0
    %209 = vmatprep.subr.mxu0 0.0
    %210 = vmatpush2.msra.mxu0 0.0
    %211 = vmatprep.subr.mxu0 0.0
    %212 = vmatpush2.msra.mxu0 0.0
    %213 = vmatprep.subr.mxu0 0.0
    %214 = vmatpush2.msra.mxu0 0.0
    %215 = vmatprep.subr.mxu0 0.0
    %216 = vmatpush2.msra.mxu0 0.0
    %217 = vmatprep.subr.mxu0 0.0
    %218 = vmatpush2.msra.mxu0 0.0
    %219 = vmatprep.subr.mxu0 0.0
    %220 = vmatpush2.msra.mxu0 0.0
    %221 = vmatprep.subr.mxu0 0.0
    %222 = vmatpush2.msra.mxu0 0.0
    %223 = vmatprep.subr.mxu0 0.0
    %224 = vmatpush2.msra.mxu0 0.0
    %225 = vmatprep.subr.mxu0 0.0
    %226 = vmatpush2.msra.mxu0 0.0
    %227 = vmatprep.subr.mxu0 0.0
    %228 = vmatpush2.msra.mxu0 0.0
    %229 = vmatprep.subr.mxu0 0.0
    %230 = vmatpush2.msra.mxu0 0.0
    %231 = vmatprep.mubr.f32.mxu0 0.0
    %232 = vmatmul.mubr.f32.gmra.mxu0 %v142
    %v233 = vpop.f32.mrf.mxu0
    %v234 = vadd.f32 %v165, %v233
    %v235 = vpop.f32.mrf.mxu0
    %236 = vdwg.mxu0
    %v237 = vmul.f32 %v234, 0.01
    %v238 = vmax.f32 %v234, %v237
    %s239 = scalar_lea.vmem [#allocation7], 128
    %v240 = vld [vmem:[%s239] sm:$0xff]
    %v241 = vld [vmem:[%s239 + $0x8] sm:$0xff]
    %v242 = vld [vmem:[%s239 + $0x10] sm:$0xff]
    %v243 = vld [vmem:[%s239 + $0x18] sm:$0xff]
    %v244 = vld [vmem:[%s239 + $0x20] sm:$0xff]
    %v245 = vld [vmem:[%s239 + $0x28] sm:$0xff]
    %v246 = vld [vmem:[%s239 + $0x30] sm:$0xff]
    %v247 = vld [vmem:[%s239 + $0x38] sm:$0xff]
    %v248 = vld [vmem:[%s239 + $0x40] sm:$0xff]
    %v249 = vld [vmem:[%s239 + $0x48] sm:$0xff]
    %v250 = vld [vmem:[%s239 + $0x50] sm:$0xff]
    %v251 = vld [vmem:[%s239 + $0x58] sm:$0xff]
    %v252 = vld [vmem:[%s239 + $0x60] sm:$0xff]
    %v253 = vld [vmem:[%s239 + $0x68] sm:$0xff]
    %v254 = vld [vmem:[%s239 + $0x70] sm:$0xff]
    %v255 = vld [vmem:[%s239 + $0x78] sm:$0xff]
    %s256 = scalar_lea.vmem %s3, 2
    %v257 = vld [vmem:[%s256] sm:$0x1]
    %v259 = vlaneseq
    %v260 = vshrl.u32 %v259, 7
    %v261 = vsub.s32 0, %v260
    %v262 = vrot.slane %v257, %v261
    %264 = vmatprep.subr.mxu0 0.0
    %265 = vmatpush1.msra.mxu0 %v255
    %266 = vmatprep.subr.mxu0 0.0
    %267 = vmatpush1.msra.mxu0 %v254
    %268 = vmatprep.subr.mxu0 0.0
    %269 = vmatpush1.msra.mxu0 %v253
    %270 = vmatprep.subr.mxu0 0.0
    %271 = vmatpush1.msra.mxu0 %v252
    %272 = vmatprep.subr.mxu0 0.0
    %273 = vmatpush1.msra.mxu0 %v251
    %274 = vmatprep.subr.mxu0 0.0
    %275 = vmatpush1.msra.mxu0 %v250
    %276 = vmatprep.subr.mxu0 0.0
    %277 = vmatpush1.msra.mxu0 %v249
    %278 = vmatprep.subr.mxu0 0.0
    %279 = vmatpush1.msra.mxu0 %v248
    %280 = vmatprep.subr.mxu0 0.0
    %281 = vmatpush1.msra.mxu0 %v247
    %282 = vmatprep.subr.mxu0 0.0
    %283 = vmatpush1.msra.mxu0 %v246
    %284 = vmatprep.subr.mxu0 0.0
    %285 = vmatpush1.msra.mxu0 %v245
    %286 = vmatprep.subr.mxu0 0.0
    %287 = vmatpush1.msra.mxu0 %v244
    %288 = vmatprep.subr.mxu0 0.0
    %289 = vmatpush1.msra.mxu0 %v243
    %290 = vmatprep.subr.mxu0 0.0
    %291 = vmatpush1.msra.mxu0 %v242
    %292 = vmatprep.subr.mxu0 0.0
    %293 = vmatpush1.msra.mxu0 %v241
    %294 = vmatprep.subr.mxu0 0.0
    %295 = vmatpush1.msra.mxu0 %v240
    %296 = vmatprep.subr.mxu0 0.0
    %297 = vmatpush2.msra.mxu0 0.0
    %298 = vmatprep.subr.mxu0 0.0
    %299 = vmatpush2.msra.mxu0 0.0
    %300 = vmatprep.subr.mxu0 0.0
    %301 = vmatpush2.msra.mxu0 0.0
    %302 = vmatprep.subr.mxu0 0.0
    %303 = vmatpush2.msra.mxu0 0.0
    %304 = vmatprep.subr.mxu0 0.0
    %305 = vmatpush2.msra.mxu0 0.0
    %306 = vmatprep.subr.mxu0 0.0
    %307 = vmatpush2.msra.mxu0 0.0
    %308 = vmatprep.subr.mxu0 0.0
    %309 = vmatpush2.msra.mxu0 0.0
    %310 = vmatprep.subr.mxu0 0.0
    %311 = vmatpush2.msra.mxu0 0.0
    %312 = vmatprep.subr.mxu0 0.0
    %313 = vmatpush2.msra.mxu0 0.0
    %314 = vmatprep.subr.mxu0 0.0
    %315 = vmatpush2.msra.mxu0 0.0
    %316 = vmatprep.subr.mxu0 0.0
    %317 = vmatpush2.msra.mxu0 0.0
    %318 = vmatprep.subr.mxu0 0.0
    %319 = vmatpush2.msra.mxu0 0.0
    %320 = vmatprep.subr.mxu0 0.0
    %321 = vmatpush2.msra.mxu0 0.0
    %322 = vmatprep.subr.mxu0 0.0
    %323 = vmatpush2.msra.mxu0 0.0
    %324 = vmatprep.subr.mxu0 0.0
    %325 = vmatpush2.msra.mxu0 0.0
    %326 = vmatprep.subr.mxu0 0.0
    %327 = vmatpush2.msra.mxu0 0.0
    %328 = vmatprep.mubr.f32.mxu0 0.0
    %329 = vmatmul.mubr.f32.gmra.mxu0 %v238
    %v330 = vpop.f32.mrf.mxu0
    %v331 = vadd.f32 %v262, %v330
    %v332 = vpop.f32.mrf.mxu0
    %333 = vdwg.mxu0
    %334 = vst [vmem:[#allocation8] sm:$0xff] %v331
    // Predicated region
    $region30: #{tpu_custom_call.1} parent=1 // pred_check
      _
    $region31: #{tpu_custom_call.1} parent=1 // pred_check_branch
      %336 = sbr.rel (0) target = $region33
    $region32: #{tpu_custom_call.1} parent=1 // pred_region
      %s338 = ssub.s32 128, 128
      %339 = vsyncadd [#allocation4], %s338
      %s341 = sshll.u32 [#allocation8], 4
      %s342 = int_to_ptr.vmem [resolvable:$true] %s341
      %344 = dma.vmem_to_hbm [thread:$0]  %s342, 128, %s4, [#allocation4]
    $region33: #{tpu_custom_call.1} parent=1 // pred_fallthru
      _
    // Predicated region
    $region34: #{tpu_custom_call.1} parent=1 // pred_check
      _
    $region35: #{tpu_custom_call.1} parent=1 // pred_check_branch
      %346 = sbr.rel (0) target = $region37
    $region36: #{tpu_custom_call.1} parent=1 // pred_region
      %347 = dma.done [#allocation4], 128
    $region37: #{tpu_custom_call.1} parent=1 // pred_fallthru
      _
    %348 = vsyncpa [#allocation3], 1
    %349 = vsyncpa [#allocation6], 1
    %350 = vsyncpa [#allocation4], 1

</llo_original>
